<compile_context>
chip_gen: v6e
topology: v6e:2x2x1
jax: 0.10.0
libtpu: 0.0.40
codegen_flags: <defaults>
</compile_context>

<pallas_src>
import functools

import jax
import jax.numpy as jnp
from jax.experimental import pallas as pl
from jax.experimental.pallas import tpu as pltpu


def _diffusion_fwd_kernel(x_ref, mo_ref, alpha_ref, sigma_ref, *out_refs,
                          objective, clip_range, rederive_pred_noise,
                          emit_noise, emit_x0, bb):
    del rederive_pred_noise  # folded into emit_noise by the wrapper
    base = pl.program_id(0) * bb

    if emit_noise and emit_x0:
        noise_ref, x0_ref = out_refs
    elif emit_noise:
        (noise_ref,) = out_refs
        x0_ref = None
    else:
        (x0_ref,) = out_refs
        noise_ref = None

    def clip(v):
        lo, hi = clip_range
        return jnp.clip(v, lo, hi)

    # bb is small (<= 8); a static unrolled loop over the samples in this block.
    for j in range(bb):
        a = alpha_ref[base + j]          # SMEM scalar lookups (no VMEM broadcast)
        s = sigma_ref[base + j]
        x = x_ref[j].astype(jnp.float32)     # (row_tile, L)
        mo = mo_ref[j].astype(jnp.float32)

        pred_noise = None
        if objective == 'pred_noise':
            x_0 = (x - s * mo) / a
            if clip_range is not None:
                x_0 = clip(x_0)
            if emit_noise:
                # only reached when clip_range is set and rederive_pred_noise=True
                pred_noise = (x - a * x_0) / s
        elif objective == 'pred_x0':
            x_0 = clip(mo) if clip_range is not None else mo
            pred_noise = (x - a * x_0) / s
        elif objective == 'pred_v':
            x_0 = a * x - s * mo                      # predict_start_from_v
            if clip_range is not None:
                x_0 = clip(x_0)
            pred_noise = (x - a * x_0) / s            # predict_noise_from_start
        else:
            raise ValueError(f'unknown objective {objective}')

        if emit_noise:
            noise_ref[j] = pred_noise.astype(noise_ref.dtype)
        if emit_x0:
            x0_ref[j] = x_0.astype(x0_ref.dtype)


def _choose_tiling(n_feat, batch, itemsize, target_block_bytes,
                   lane_cap=2048, max_samples_per_block=8):
    """Pick (n_pad, lanes, rows, row_tile, samples_per_block).

    n_pad: n_feat rounded up to a multiple of 128 (lane-dense, unmasked vst).
    lanes: multiple of 128 dividing n_pad; prefer widths whose row count is a
           multiple of 8 (full sublane occupancy).
    row_tile: divisor of rows, multiple of 8 (or == rows), sized to the block target.
    samples_per_block (bb): >1 only when a whole sample is far below the target,
           to amortize per-grid-step overhead.
    """
    n_pad = ((n_feat + 127) // 128) * 128

    cands = [d for d in range(128, min(lane_cap, n_pad) + 1, 128) if n_pad % d == 0]
    full = [d for d in cands if (n_pad // d) % 8 == 0]
    lanes = max(full) if full else max(cands)
    rows = n_pad // lanes

    slab = rows * lanes * itemsize          # one sample's (padded) feature bytes

    if slab >= target_block_bytes:
        bb = 1
        row_cands = [d for d in range(1, rows + 1)
                     if rows % d == 0 and (d % 8 == 0 or d == rows)]
        fitting = [d for d in row_cands
                   if d * lanes * itemsize <= target_block_bytes]
        row_tile = max(fitting) if fitting else min(row_cands)
    else:
        row_tile = rows
        want = max(1, min(max_samples_per_block, target_block_bytes // max(slab, 1)))
        bb = max(d for d in range(1, batch + 1) if batch % d == 0 and d <= want)

    # Keep >= 4 parallel grid steps when possible (v7x has 2 TensorCores).
    def grid_size(bb_, rt_):
        return (batch // bb_) * (rows // rt_)

    while grid_size(bb, row_tile) < 4 and bb > 1:
        bb = max(d for d in range(1, bb) if batch % d == 0)
    while grid_size(bb, row_tile) < 4:
        smaller = [d for d in range(8, row_tile, 8) if rows % d == 0]
        if not smaller:
            break
        row_tile = max(smaller)

    return n_pad, lanes, rows, row_tile, bb


def gaussian_diffusion_forward(x, model_output, alpha_t, sigma_t,
                               objective='pred_v', clip_range=None,
                               rederive_pred_noise=False,
                               target_block_bytes=1 << 20):
    """x, model_output: (B, C, H, W) (or any (B, ...)).  alpha_t, sigma_t: per-sample.

    Returns (pred_noise, x_0), each with x's shape and dtype.
    NOTE: keep target_block_bytes <= ~1.5 MiB on v5e; on v6e/v7x it can be raised
    (2-4 MiB) together with pltpu.CompilerParams(vmem_limit_bytes=...).
    """
    assert x.shape == model_output.shape
    assert objective in ('pred_noise', 'pred_x0', 'pred_v')
    B = x.shape[0]
    N = 1
    for d in x.shape[1:]:
        N *= int(d)

    itemsize = x.dtype.itemsize
    n_pad, lanes, rows, row_tile, bb = _choose_tiling(
        N, B, itemsize, target_block_bytes)

    # Layout plumbing only: per-sample contiguous (rows, lanes) slab, lane axis last.
    x2 = x.reshape(B, N)
    mo2 = model_output.reshape(B, N)
    if n_pad != N:
        pad = ((0, 0), (0, n_pad - N))
        x2 = jnp.pad(x2, pad)
        mo2 = jnp.pad(mo2, pad)
    x3 = x2.reshape(B, rows, lanes)
    mo3 = mo2.reshape(B, rows, lanes)

    a = alpha_t.reshape(B).astype(jnp.float32)
    s = sigma_t.reshape(B).astype(jnp.float32)

    # Pass-through detection: never stream an output that is exactly an input.
    if objective == 'pred_noise':
        emit_noise = (clip_range is not None) and rederive_pred_noise
        emit_x0 = True
    elif objective == 'pred_x0':
        emit_noise = True
        emit_x0 = clip_range is not None
    else:  # pred_v
        emit_noise = True
        emit_x0 = True
    n_out = int(emit_noise) + int(emit_x0)

    kernel = functools.partial(
        _diffusion_fwd_kernel,
        objective=objective, clip_range=clip_range,
        rederive_pred_noise=rederive_pred_noise,
        emit_noise=emit_noise, emit_x0=emit_x0, bb=bb)

    grid = (B // bb, rows // row_tile)
    feat_spec = pl.BlockSpec((bb, row_tile, lanes), lambda i, j: (i, j, 0))
    smem_spec = pl.BlockSpec(memory_space=pltpu.MemorySpace.SMEM)

    cost = pl.CostEstimate(
        flops=int(8 * B * n_pad),
        transcendentals=0,
        bytes_accessed=int((2 + n_out) * B * n_pad * itemsize))

    outs = pl.pallas_call(
        kernel,
        out_shape=tuple(jax.ShapeDtypeStruct((B, rows, lanes), x.dtype)
                        for _ in range(n_out)),
        grid_spec=pltpu.PrefetchScalarGridSpec(
            num_scalar_prefetch=0,
            grid=grid,
            in_specs=[feat_spec, feat_spec, smem_spec, smem_spec],
            out_specs=tuple([feat_spec] * n_out)),
        compiler_params=pltpu.CompilerParams(
            dimension_semantics=("parallel", "parallel")),
        cost_estimate=cost,
    )(x3, mo3, a, s)

    def unpack(o):
        o = o.reshape(B, n_pad)
        if n_pad != N:
            o = o[:, :N]
        return o.reshape(x.shape)

    outs = list(outs)
    pred_noise = unpack(outs.pop(0)) if emit_noise else model_output
    x_0 = unpack(outs.pop(0)) if emit_x0 else model_output
    return pred_noise, x_0


def _reference_forward(x, model_output, alpha_t, sigma_t,
                       objective='pred_v', clip_range=None,
                       rederive_pred_noise=False):
    """Faithful JAX port of GaussianDiffusion.forward (same op ordering as PyTorch)."""
    a = alpha_t.reshape((-1,) + (1,) * (x.ndim - 1)).astype(jnp.float32)
    s = sigma_t.reshape((-1,) + (1,) * (x.ndim - 1)).astype(jnp.float32)

    def clip(v):
        if clip_range is None:
            return v
        return jnp.clip(v, clip_range[0], clip_range[1])

    if objective == 'pred_noise':
        pred_noise = model_output
        x_0 = (x - s * pred_noise) / a
        if clip_range is not None:
            x_0 = clip(x_0)
            if rederive_pred_noise:
                pred_noise = (x - a * x_0) / s
    elif objective == 'pred_x0':
        x_0 = clip(model_output)
        pred_noise = (x - a * x_0) / s
    else:  # pred_v
        v = model_output
        x_0 = clip(a * x - s * v)
        pred_noise = (x - a * x_0) / s
    return pred_noise, x_0


if __name__ == "__main__":
    key = jax.random.PRNGKey(0)
    B, C, H, W = 2, 4, 16, 16   # primary NCHW test shape; flattened features = 1024

    k1, k2, k3, k4, k5, k6, k7 = jax.random.split(key, 7)
    # t in (0, 1); alpha = cos(t*pi/2), sigma = sin(t*pi/2) — shared by all cases.
    t = jax.random.uniform(k3, (B,), minval=1e-4, maxval=1.0 - 1e-4)
    alpha_t = jnp.cos(t * jnp.pi / 2.0)
    sigma_t = jnp.sin(t * jnp.pi / 2.0)

    configs = [
        dict(objective='pred_v', clip_range=None),
        dict(objective='pred_v', clip_range=(-1.0, 1.0)),
        dict(objective='pred_noise', clip_range=None),                 # noise pass-through
        dict(objective='pred_noise', clip_range=(-1.0, 1.0),
             rederive_pred_noise=True),
        dict(objective='pred_x0', clip_range=None),                    # x_0 pass-through
        dict(objective='pred_x0', clip_range=(-1.0, 1.0)),
    ]

    test_cases = [
        # (x_key, mo_key, shape, target_block_bytes, configs)
        (k1, k2, (B, C, H, W), 1 << 20, configs),
        # Larger feature map + small block target -> multiple row tiles per sample.
        (k4, k5, (B, 4, 64, 128), 64 * 1024, configs[:1]),
        # Feature count not divisible by 128 -> exercises the padding path.
        (k6, k7, (B, 3, 10, 10), 1 << 20, configs[:1]),
    ]

    ok = True
    for kx, km, shape, tgt, cfgs in test_cases:
        x = jax.random.normal(kx, shape, dtype=jnp.float32)
        model_output = jax.random.normal(km, shape, dtype=jnp.float32)
        for cfg in cfgs:
            pn, x0 = gaussian_diffusion_forward(
                x, model_output, alpha_t, sigma_t,
                target_block_bytes=tgt, **cfg)
            pn = jax.block_until_ready(pn)
            x0 = jax.block_until_ready(x0)
            pn_ref, x0_ref = _reference_forward(x, model_output, alpha_t, sigma_t, **cfg)
            ok &= bool(jnp.allclose(pn, pn_ref, atol=1e-5, rtol=1e-5))
            ok &= bool(jnp.allclose(x0, x0_ref, atol=1e-5, rtol=1e-5))

    if ok:
        print("KERNEL_OK")
    else:
        print("KERNEL_MISMATCH")
</pallas_src>

<mosaic_0001>
module attributes {stable_mosaic.version = 11 : i64} {
  func.func @_diffusion_fwd_kernel(%arg0: i32, %arg1: i32, %arg2: memref<1x8x128xf32, #tpu.memory_space<vmem>>, %arg3: memref<1x8x128xf32, #tpu.memory_space<vmem>>, %arg4: memref<2xf32, #tpu.memory_space<smem>>, %arg5: memref<2xf32, #tpu.memory_space<smem>>, %arg6: memref<1x8x128xf32, #tpu.memory_space<vmem>>, %arg7: memref<1x8x128xf32, #tpu.memory_space<vmem>>) attributes {dimension_semantics = [#tpu.dimension_semantics<parallel>, #tpu.dimension_semantics<parallel>], iteration_bounds = array<i64: 2, 1>, scalar_prefetch = 0 : i64, scratch_operands = 0 : i64, tpu.core_type = #tpu.core_type<tc>, window_params = [{transform_indices = @transform_0, window_bounds = array<i64: 1, 8, 128>}, {transform_indices = @transform_1, window_bounds = array<i64: 1, 8, 128>}, {transform_indices = @transform_2, window_bounds = array<i64: 2>}, {transform_indices = @transform_3, window_bounds = array<i64: 2>}, {transform_indices = @transform_4, window_bounds = array<i64: 1, 8, 128>}, {transform_indices = @transform_5, window_bounds = array<i64: 1, 8, 128>}]} {
    %c1_i32 = arith.constant 1 : i32
    %0 = arith.muli %arg0, %c1_i32 : i32
    %c0_i32 = arith.constant 0 : i32
    %1 = arith.addi %0, %c0_i32 : i32
    %2 = arith.index_cast %1 : i32 to index
    %3 = memref.load %arg4[%2] : memref<2xf32, #tpu.memory_space<smem>>
    %c0_i32_0 = arith.constant 0 : i32
    %4 = arith.addi %0, %c0_i32_0 : i32
    %5 = arith.index_cast %4 : i32 to index
    %6 = memref.load %arg5[%5] : memref<2xf32, #tpu.memory_space<smem>>
    %c0 = arith.constant 0 : index
    %c0_1 = arith.constant 0 : index
    %c0_2 = arith.constant 0 : index
    %7 = vector.load %arg2[%c0, %c0_1, %c0_2] : memref<1x8x128xf32, #tpu.memory_space<vmem>>, vector<1x8x128xf32>
    %8 = vector.shape_cast %7 : vector<1x8x128xf32> to vector<8x128xf32>
    %c0_3 = arith.constant 0 : index
    %c0_4 = arith.constant 0 : index
    %c0_5 = arith.constant 0 : index
    %9 = vector.load %arg3[%c0_3, %c0_4, %c0_5] : memref<1x8x128xf32, #tpu.memory_space<vmem>>, vector<1x8x128xf32>
    %10 = vector.shape_cast %9 : vector<1x8x128xf32> to vector<8x128xf32>
    %11 = vector.broadcast %3 : f32 to vector<8x128xf32>
    %12 = arith.mulf %11, %8 : vector<8x128xf32>
    %13 = vector.broadcast %6 : f32 to vector<8x128xf32>
    %14 = arith.mulf %13, %10 : vector<8x128xf32>
    %15 = arith.subf %12, %14 : vector<8x128xf32>
    %16 = vector.broadcast %3 : f32 to vector<8x128xf32>
    %17 = arith.mulf %16, %15 : vector<8x128xf32>
    %18 = arith.subf %8, %17 : vector<8x128xf32>
    %19 = vector.broadcast %6 : f32 to vector<8x128xf32>
    %20 = arith.divf %18, %19 : vector<8x128xf32>
    %c0_6 = arith.constant 0 : index
    %c0_7 = arith.constant 0 : index
    %c0_8 = arith.constant 0 : index
    %21 = vector.load %arg6[%c0_6, %c0_7, %c0_8] : memref<1x8x128xf32, #tpu.memory_space<vmem>>, vector<1x8x128xf32>
    %22 = vector.shape_cast %21 : vector<1x8x128xf32> to vector<8x128xf32>
    %23 = vector.shape_cast %20 : vector<8x128xf32> to vector<1x8x128xf32>
    tpu.vector_store %arg6[%c0_6, %c0_7, %c0_8], %23 {strides = array<i32>} : memref<1x8x128xf32, #tpu.memory_space<vmem>>, vector<1x8x128xf32>,
    %c0_9 = arith.constant 0 : index
    %c0_10 = arith.constant 0 : index
    %c0_11 = arith.constant 0 : index
    %24 = vector.load %arg7[%c0_9, %c0_10, %c0_11] : memref<1x8x128xf32, #tpu.memory_space<vmem>>, vector<1x8x128xf32>
    %25 = vector.shape_cast %24 : vector<1x8x128xf32> to vector<8x128xf32>
    %26 = vector.shape_cast %15 : vector<8x128xf32> to vector<1x8x128xf32>
    tpu.vector_store %arg7[%c0_9, %c0_10, %c0_11], %26 {strides = array<i32>} : memref<1x8x128xf32, #tpu.memory_space<vmem>>, vector<1x8x128xf32>,
    return
  }
  func.func @transform_0(%arg0: i32, %arg1: i32) -> (i32, i32, i32) {
    %c0_i32 = arith.constant 0 : i32
    %c0_i32_0 = arith.constant 0 : i32
    return %arg0, %arg1, %c0_i32 : i32, i32, i32
  }
  func.func @transform_1(%arg0: i32, %arg1: i32) -> (i32, i32, i32) {
    %c0_i32 = arith.constant 0 : i32
    %c0_i32_0 = arith.constant 0 : i32
    return %arg0, %arg1, %c0_i32 : i32, i32, i32
  }
  func.func @transform_2(%arg0: i32, %arg1: i32) -> i32 {
    %c0_i32 = arith.constant 0 : i32
    %c0_i32_0 = arith.constant 0 : i32
    return %c0_i32 : i32
  }
  func.func @transform_3(%arg0: i32, %arg1: i32) -> i32 {
    %c0_i32 = arith.constant 0 : i32
    %c0_i32_0 = arith.constant 0 : i32
    return %c0_i32 : i32
  }
  func.func @transform_4(%arg0: i32, %arg1: i32) -> (i32, i32, i32) {
    %c0_i32 = arith.constant 0 : i32
    %c0_i32_0 = arith.constant 0 : i32
    return %arg0, %arg1, %c0_i32 : i32, i32, i32
  }
  func.func @transform_5(%arg0: i32, %arg1: i32) -> (i32, i32, i32) {
    %c0_i32 = arith.constant 0 : i32
    %c0_i32_0 = arith.constant 0 : i32
    return %arg0, %arg1, %c0_i32 : i32, i32, i32
  }
}

</mosaic_0001>

<llo_original>
// kernel: tpu_custom_call.1
$region0: #{tpu_custom_call.1}
  #allocation0 [shape = 'u32[]', space=smem, size = 0x4, offset = 0x4, fixed_abs, tag = 'smem constant byte address 0x4 - core index']
  #allocation1 [shape = 'u32[144,128]{1,0:T(1,128)}', space=vmem, size = 0x12000, scoped, tag = 'internal scratch']
  %s0 = inlined_call_operand.hbm [shape: f32[2,8,128], index: 0, kind: input, shape index: {}]
  %s1 = inlined_call_operand.hbm [shape: f32[2,8,128], index: 1, kind: input, shape index: {}]
  %s2 = inlined_call_operand.vmem [shape: f32[2], index: 2, kind: input, shape index: {}]
  %s3 = inlined_call_operand.vmem [shape: f32[2], index: 3, kind: input, shape index: {}]
  %s4 = inlined_call_operand.hbm [shape: f32[2,8,128], index: 4, kind: output, shape index: {0}]
  %s5 = inlined_call_operand.hbm [shape: f32[2,8,128], index: 5, kind: output, shape index: {1}]
  %6 = xla_tuple %s4, %s5
  %s7 = sld [smem:[#allocation0]]
  $region73: #{tpu_custom_call.1} parent=0
    _
  %s9 = ssub.s32 1, %s7
  %s10 = scalar_select 0, %s9, %s7
  $region1: #{tpu_custom_call.1} parent=0
    #allocation2 [shape = 'u8[8192]{0}', space=vmem, size = 0x2000, scoped, tag = 'input window, operand 0']
    #allocation3 [shape = 's32[2]{0}', space=sflag, size = 0x8, scoped, tag = 'scoped memory for tpu_custom_call.1']
    #allocation4 [shape = 's32[2]{0}', space=sflag, size = 0x8, scoped, tag = 'scoped memory for tpu_custom_call.1']
    #allocation5 [shape = 's32[2]{0}', space=sflag, size = 0x8, scoped, tag = 'scoped memory for tpu_custom_call.1']
    #allocation6 [shape = 'u8[8192]{0}', space=vmem, size = 0x2000, scoped, tag = 'input window, operand 1']
    #allocation7 [shape = 's32[2]{0}', space=sflag, size = 0x8, scoped, tag = 'scoped memory for tpu_custom_call.1']
    #allocation8 [shape = 'u8[512]{0}', space=smem, size = 0x200, scoped, tag = 'input window, operand 2, single buffered']
    #allocation9 [shape = 'u8[512]{0}', space=smem, size = 0x200, scoped, tag = 'input window, operand 3, single buffered']
    #allocation10 [shape = 's32[1]{0}', space=sflag, size = 0x4, scoped, tag = 'scoped memory for tpu_custom_call.1']
    #allocation11 [shape = 'u8[8192]{0}', space=vmem, size = 0x2000, scoped, tag = 'output window, operand 0']
    #allocation12 [shape = 'u8[8192]{0}', space=vmem, size = 0x2000, scoped, tag = 'output window, operand 1']
    #allocation13 [shape = 's32[2]{0}', space=sflag, size = 0x8, scoped, tag = 'scoped memory for tpu_custom_call.1']
    %11 = vsyncpa [#allocation3], 0
    %s12 = scalar_lea.sflag [#allocation3], 1
    %13 = vsyncpa %s12, 0
    %14 = vsyncpa [#allocation7], 0
    %s15 = scalar_lea.sflag [#allocation7], 1
    %16 = vsyncpa %s15, 0
    %17 = vsyncpa [#allocation5], 0
    %18 = vsyncpa [#allocation10], 0
    %19 = vsyncpa [#allocation4], 0
    %s20 = scalar_lea.sflag [#allocation4], 1
    %21 = vsyncpa %s20, 0
    %22 = vsyncpa [#allocation13], 0
    %s23 = scalar_lea.sflag [#allocation13], 1
    %24 = vsyncpa %s23, 0
    loop: start=0, step=1, limit=4
    $region2: #{tpu_custom_call.1} parent=1 // loop_pre_header
      _
    $region3: #{tpu_custom_call.1} parent=1 // loop_header
      %s26 = sphi 0, %s30
      %p27 = scmp.ge.s32.totalorder %s26, 4
      %s33 = sphi 0, %s45
      %s34 = sphi 0, %s41
      %s35 = sphi 0, %s33
      %s36 = sphi 0, %s34
      %s37 = sphi 0, %s35
      %s38 = sphi 0, %s36
      %s50 = sphi 0, %s52
      %s53 = sphi 0, %s50
      %s54 = sphi 0, %s53
      %s70 = sphi 0, %s54
      %s78 = sphi 0, %s80
      %s81 = sphi 0, %s78
      %s82 = sphi 0, %s81
      %s98 = sphi 0, %s82
      %s102 = sphi 0, %s102
      %s104 = sphi 0, %s102
      %s105 = sphi 0, %s104
      %s119 = sphi 0, %s105
      %s123 = sphi 0, %s123
      %s125 = sphi 0, %s123
      %s126 = sphi 0, %s125
      %s140 = sphi 0, %s126
      %s148 = sphi 0, %s150
      %s151 = sphi 0, %s148
      %s152 = sphi 0, %s151
      %s168 = sphi 0, %s152
      %s176 = sphi 0, %s178
      %s179 = sphi 0, %s176
      %s180 = sphi 0, %s179
      %s196 = sphi 0, %s180
    $region4: #{tpu_custom_call.1} parent=1 // loop_header_branch
      %29 = sbr.rel (%p27) target = $region8
    $region5: #{tpu_custom_call.1} parent=1 // loop_body
      %s31 = ssub.s32 %s26, 1
      %s32 = ssub.s32 %s26, 2
      %s39 = sadd.s32 1, %s34
      %p40 = scmp.ge.s32.totalorder %s39, 1
      %s41 = scalar_select %p40, 0, %s39
      %s42 = sadd.s32 1, %s33
      %s43 = scalar_select %p40, %s42, %s33
      %p44 = scmp.ge.s32.totalorder %s43, 2
      %s45 = scalar_select %p44, 0, %s43
      %s46 = ssub.s32 %s33, %s45
      %s47 = ssub.s32 %s34, %s41
      %s48 = sor.u32 %s46, %s47
      %p49 = scmp.eq.s32.totalorder %s48, 0
      %s51 = sadd.s32 %s50, 1
      %s52 = scalar_select %p49, %s50, %s51
      %p55 = pneg %p49
      %p56 = scmp.eq.s32.totalorder %s26, 1
      %p57 = por %p55, %p56
      %p58 = scmp.ne.s32.totalorder %s50, %s53
      %p59 = scmp.eq.s32.totalorder %s26, 0
      %p60 = por %p58, %p59
      %p61 = scmp.ne.s32.totalorder %s50, %s53
      %p62 = scmp.eq.s32.totalorder %s31, 1
      %p63 = por %p61, %p62
      %p64 = scmp.ne.s32.totalorder %s53, %s54
      %p65 = scmp.eq.s32.totalorder %s31, 0
      %p66 = por %p64, %p65
      %p67 = scmp.ne.s32.totalorder %s53, %s54
      %p68 = scmp.eq.s32.totalorder %s32, 1
      %p69 = por %p67, %p68
      %p71 = scmp.ne.s32.totalorder %s54, %s70
      %p72 = scmp.eq.s32.totalorder %s32, 0
      %p73 = por %p71, %p72
      %s74 = ssub.s32 %s33, %s45
      %s75 = ssub.s32 %s34, %s41
      %s76 = sor.u32 %s74, %s75
      %p77 = scmp.eq.s32.totalorder %s76, 0
      %s79 = sadd.s32 %s78, 1
      %s80 = scalar_select %p77, %s78, %s79
      %p83 = pneg %p77
      %p84 = scmp.eq.s32.totalorder %s26, 1
      %p85 = por %p83, %p84
      %p86 = scmp.ne.s32.totalorder %s78, %s81
      %p87 = scmp.eq.s32.totalorder %s26, 0
      %p88 = por %p86, %p87
      %p89 = scmp.ne.s32.totalorder %s78, %s81
      %p90 = scmp.eq.s32.totalorder %s31, 1
      %p91 = por %p89, %p90
      %p92 = scmp.ne.s32.totalorder %s81, %s82
      %p93 = scmp.eq.s32.totalorder %s31, 0
      %p94 = por %p92, %p93
      %p95 = scmp.ne.s32.totalorder %s81, %s82
      %p96 = scmp.eq.s32.totalorder %s32, 1
      %p97 = por %p95, %p96
      %p99 = scmp.ne.s32.totalorder %s82, %s98
      %p100 = scmp.eq.s32.totalorder %s32, 0
      %p101 = por %p99, %p100
      %s103 = sadd.s32 %s102, 1
      %p106 = scmp.eq.s32.totalorder %s26, 1
      %p107 = scmp.ne.s32.totalorder %s102, %s104
      %p108 = scmp.eq.s32.totalorder %s26, 0
      %p109 = por %p107, %p108
      %p110 = scmp.ne.s32.totalorder %s102, %s104
      %p111 = scmp.eq.s32.totalorder %s31, 1
      %p112 = por %p110, %p111
      %p113 = scmp.ne.s32.totalorder %s104, %s105
      %p114 = scmp.eq.s32.totalorder %s31, 0
      %p115 = por %p113, %p114
      %p116 = scmp.ne.s32.totalorder %s104, %s105
      %p117 = scmp.eq.s32.totalorder %s32, 1
      %p118 = por %p116, %p117
      %p120 = scmp.ne.s32.totalorder %s105, %s119
      %p121 = scmp.eq.s32.totalorder %s32, 0
      %p122 = por %p120, %p121
      %s124 = sadd.s32 %s123, 1
      %p127 = scmp.eq.s32.totalorder %s26, 1
      %p128 = scmp.ne.s32.totalorder %s123, %s125
      %p129 = scmp.eq.s32.totalorder %s26, 0
      %p130 = por %p128, %p129
      %p131 = scmp.ne.s32.totalorder %s123, %s125
      %p132 = scmp.eq.s32.totalorder %s31, 1
      %p133 = por %p131, %p132
      %p134 = scmp.ne.s32.totalorder %s125, %s126
      %p135 = scmp.eq.s32.totalorder %s31, 0
      %p136 = por %p134, %p135
      %p137 = scmp.ne.s32.totalorder %s125, %s126
      %p138 = scmp.eq.s32.totalorder %s32, 1
      %p139 = por %p137, %p138
      %p141 = scmp.ne.s32.totalorder %s126, %s140
      %p142 = scmp.eq.s32.totalorder %s32, 0
      %p143 = por %p141, %p142
      %s144 = ssub.s32 %s33, %s45
      %s145 = ssub.s32 %s34, %s41
      %s146 = sor.u32 %s144, %s145
      %p147 = scmp.eq.s32.totalorder %s146, 0
      %s149 = sadd.s32 %s148, 1
      %s150 = scalar_select %p147, %s148, %s149
      %p153 = pneg %p147
      %p154 = scmp.eq.s32.totalorder %s26, 1
      %p155 = por %p153, %p154
      %p156 = scmp.ne.s32.totalorder %s148, %s151
      %p157 = scmp.eq.s32.totalorder %s26, 0
      %p158 = por %p156, %p157
      %p159 = scmp.ne.s32.totalorder %s148, %s151
      %p160 = scmp.eq.s32.totalorder %s31, 1
      %p161 = por %p159, %p160
      %p162 = scmp.ne.s32.totalorder %s151, %s152
      %p163 = scmp.eq.s32.totalorder %s31, 0
      %p164 = por %p162, %p163
      %p165 = scmp.ne.s32.totalorder %s151, %s152
      %p166 = scmp.eq.s32.totalorder %s32, 1
      %p167 = por %p165, %p166
      %p169 = scmp.ne.s32.totalorder %s152, %s168
      %p170 = scmp.eq.s32.totalorder %s32, 0
      %p171 = por %p169, %p170
      %s172 = ssub.s32 %s33, %s45
      %s173 = ssub.s32 %s34, %s41
      %s174 = sor.u32 %s172, %s173
      %p175 = scmp.eq.s32.totalorder %s174, 0
      %s177 = sadd.s32 %s176, 1
      %s178 = scalar_select %p175, %s176, %s177
      %p181 = pneg %p175
      %p182 = scmp.eq.s32.totalorder %s26, 1
      %p183 = por %p181, %p182
      %p184 = scmp.ne.s32.totalorder %s176, %s179
      %p185 = scmp.eq.s32.totalorder %s26, 0
      %p186 = por %p184, %p185
      %p187 = scmp.ne.s32.totalorder %s176, %s179
      %p188 = scmp.eq.s32.totalorder %s31, 1
      %p189 = por %p187, %p188
      %p190 = scmp.ne.s32.totalorder %s179, %s180
      %p191 = scmp.eq.s32.totalorder %s31, 0
      %p192 = por %p190, %p191
      %p193 = scmp.ne.s32.totalorder %s179, %s180
      %p194 = scmp.eq.s32.totalorder %s32, 1
      %p195 = por %p193, %p194
      %p197 = scmp.ne.s32.totalorder %s180, %s196
      %p198 = scmp.eq.s32.totalorder %s32, 0
      %p199 = por %p197, %p198
      %p200 = scmp.le.s32.totalorder 1, %s26
      %p201 = scmp.lt.s32.totalorder %s26, 3
      %p202 = pnand %p200, %p201
      %p203 = pneg %p202
      // Predicated region
      $region9: #{tpu_custom_call.1} parent=5 // pred_check
        _
      $region10: #{tpu_custom_call.1} parent=5 // pred_check_branch
        %205 = sbr.rel (%p202) target = $region12
      $region11: #{tpu_custom_call.1} parent=5 // pred_region
        %s206 = ssub.s32 %s26, 1
        // Predicated region
        $region13: #{tpu_custom_call.1} parent=11 // pred_check
          %p207 = pneg %p115
        $region14: #{tpu_custom_call.1} parent=11 // pred_check_branch
          %209 = sbr.rel (%p207) target = $region16
        $region15: #{tpu_custom_call.1} parent=11 // pred_region
          %s211 = ssub.s32 16, 16
          %212 = vsyncadd [#allocation5], %s211
          %s214 = sshll.u32 %s2, 4
          %s215 = int_to_ptr.vmem [resolvable:$true] %s214
          %217 = dma.vmem_to_smem %s215, 16, [#allocation8], [#allocation5]
        $region16: #{tpu_custom_call.1} parent=11 // pred_fallthru
          _
        // Predicated region
        $region17: #{tpu_custom_call.1} parent=11 // pred_check
          %p218 = pneg %p136
        $region18: #{tpu_custom_call.1} parent=11 // pred_check_branch
          %220 = sbr.rel (%p218) target = $region20
        $region19: #{tpu_custom_call.1} parent=11 // pred_region
          %s222 = ssub.s32 16, 16
          %223 = vsyncadd [#allocation10], %s222
          %s225 = sshll.u32 %s3, 4
          %s226 = int_to_ptr.vmem [resolvable:$true] %s225
          %228 = dma.vmem_to_smem %s226, 16, [#allocation9], [#allocation10]
        $region20: #{tpu_custom_call.1} parent=11 // pred_fallthru
          _
      $region12: #{tpu_custom_call.1} parent=5 // pred_fallthru
        _
      %p229 = scmp.lt.s32.totalorder %s26, 2
      // Predicated region
      $region21: #{tpu_custom_call.1} parent=5 // pred_check
        %p230 = pneg %p229
      $region22: #{tpu_custom_call.1} parent=5 // pred_check_branch
        %232 = sbr.rel (%p230) target = $region24
      $region23: #{tpu_custom_call.1} parent=5 // pred_region
        // Predicated region
        $region25: #{tpu_custom_call.1} parent=23 // pred_check
          %p233 = pneg %p60
        $region26: #{tpu_custom_call.1} parent=23 // pred_check_branch
          %235 = sbr.rel (%p233) target = $region28
        $region27: #{tpu_custom_call.1} parent=23 // pred_region
          %s236 = sand.u32 %s50, 1
          %s237 = scalar_lea.sflag [#allocation3], %s236
          %s238 = sand.u32 %s50, 1
          %s239 = smul.addr %s238, 8
          %s240 = scalar_lea.vmem [#allocation2], %s239
          %s242 = ssub.s32 128, 128
          %243 = vsyncadd %s237, %s242
          %s244 = sadd.s32 %s34, %s33
          %s245 = smul.addr %s244, 128
          %s246 = scalar_lea.hbm %s0, %s245
          %s248 = sshll.u32 %s240, 4
          %s249 = int_to_ptr.vmem [resolvable:$true] %s248
          %251 = dma.hbm_to_vmem [thread:$0]  %s246, 128, %s249, %s237
        $region28: #{tpu_custom_call.1} parent=23 // pred_fallthru
          _
        // Predicated region
        $region29: #{tpu_custom_call.1} parent=23 // pred_check
          %p252 = pneg %p88
        $region30: #{tpu_custom_call.1} parent=23 // pred_check_branch
          %254 = sbr.rel (%p252) target = $region32
        $region31: #{tpu_custom_call.1} parent=23 // pred_region
          %s255 = sand.u32 %s78, 1
          %s256 = scalar_lea.sflag [#allocation7], %s255
          %s257 = sand.u32 %s78, 1
          %s258 = smul.addr %s257, 8
          %s259 = scalar_lea.vmem [#allocation6], %s258
          %s261 = ssub.s32 128, 128
          %262 = vsyncadd %s256, %s261
          %s263 = sadd.s32 %s34, %s33
          %s264 = smul.addr %s263, 128
          %s265 = scalar_lea.hbm %s1, %s264
          %s267 = sshll.u32 %s259, 4
          %s268 = int_to_ptr.vmem [resolvable:$true] %s267
          %270 = dma.hbm_to_vmem [thread:$0]  %s265, 128, %s268, %s256
        $region32: #{tpu_custom_call.1} parent=23 // pred_fallthru
          _
      $region24: #{tpu_custom_call.1} parent=5 // pred_fallthru
        _
      %p271 = scmp.le.s32.totalorder 1, %s26
      %p272 = scmp.lt.s32.totalorder %s26, 3
      %p273 = pnand %p271, %p272
      %p274 = pneg %p273
      // Predicated region
      $region33: #{tpu_custom_call.1} parent=5 // pred_check
        _
      $region34: #{tpu_custom_call.1} parent=5 // pred_check_branch
        %276 = sbr.rel (%p273) target = $region36
      $region35: #{tpu_custom_call.1} parent=5 // pred_region
        %s277 = ssub.s32 %s26, 1
        %s278 = sand.u32 %s53, 1
        %s279 = scalar_lea.sflag [#allocation3], %s278
        %s280 = sand.u32 %s53, 1
        %s281 = smul.addr %s280, 8
        %s282 = scalar_lea.vmem [#allocation2], %s281
        // Predicated region
        $region37: #{tpu_custom_call.1} parent=35 // pred_check
          %p283 = pneg %p66
        $region38: #{tpu_custom_call.1} parent=35 // pred_check_branch
          %285 = sbr.rel (%p283) target = $region40
        $region39: #{tpu_custom_call.1} parent=35 // pred_region
          %286 = dma.done %s279, 128
        $region40: #{tpu_custom_call.1} parent=35 // pred_fallthru
          _
        %s287 = sand.u32 %s81, 1
        %s288 = scalar_lea.sflag [#allocation7], %s287
        %s289 = sand.u32 %s81, 1
        %s290 = smul.addr %s289, 8
        %s291 = scalar_lea.vmem [#allocation6], %s290
        // Predicated region
        $region41: #{tpu_custom_call.1} parent=35 // pred_check
          %p292 = pneg %p94
        $region42: #{tpu_custom_call.1} parent=35 // pred_check_branch
          %294 = sbr.rel (%p292) target = $region44
        $region43: #{tpu_custom_call.1} parent=35 // pred_region
          %295 = dma.done %s288, 128
        $region44: #{tpu_custom_call.1} parent=35 // pred_fallthru
          _
        // Predicated region
        $region45: #{tpu_custom_call.1} parent=35 // pred_check
          %p296 = pneg %p115
        $region46: #{tpu_custom_call.1} parent=35 // pred_check_branch
          %298 = sbr.rel (%p296) target = $region48
        $region47: #{tpu_custom_call.1} parent=35 // pred_region
          %299 = dma.done [#allocation5], 16
        $region48: #{tpu_custom_call.1} parent=35 // pred_fallthru
          _
        // Predicated region
        $region49: #{tpu_custom_call.1} parent=35 // pred_check
          %p300 = pneg %p136
        $region50: #{tpu_custom_call.1} parent=35 // pred_check_branch
          %302 = sbr.rel (%p300) target = $region52
        $region51: #{tpu_custom_call.1} parent=35 // pred_region
          %303 = dma.done [#allocation10], 16
        $region52: #{tpu_custom_call.1} parent=35 // pred_fallthru
          _
        %304 = sfence
        %s305 = sand.u32 %s53, 1
        %s306 = scalar_lea.sflag [#allocation3], %s305
        %s307 = sand.u32 %s53, 1
        %s308 = smul.addr %s307, 8
        %s309 = scalar_lea.vmem [#allocation2], %s308
        %p310 = pneg %p66
        %p311 = pneg %p63
        %s312 = sand.u32 %s81, 1
        %s313 = scalar_lea.sflag [#allocation7], %s312
        %s314 = sand.u32 %s81, 1
        %s315 = smul.addr %s314, 8
        %s316 = scalar_lea.vmem [#allocation6], %s315
        %p317 = pneg %p94
        %p318 = pneg %p91
        %p319 = pneg %p115
        %p320 = pneg %p112
        %p321 = pneg %p136
        %p322 = pneg %p133
        %p323 = pneg %p164
        %p324 = pneg %p161
        %s325 = sand.u32 %s151, 1
        %s326 = scalar_lea.sflag [#allocation4], %s325
        %s327 = sand.u32 %s151, 1
        %s328 = smul.addr %s327, 8
        %s329 = scalar_lea.vmem [#allocation11], %s328
        %p330 = pneg %p192
        %p331 = pneg %p189
        %s332 = sand.u32 %s179, 1
        %s333 = scalar_lea.sflag [#allocation13], %s332
        %s334 = sand.u32 %s179, 1
        %s335 = smul.addr %s334, 8
        %s336 = scalar_lea.vmem [#allocation12], %s335
        %s337 = sld [smem:[#allocation8 + %s35]]
        %s338 = sld [smem:[#allocation9 + %s35]]
        %v339 = vld [vmem:[%s282] sm:$0xff]
        %v340 = vld [vmem:[%s291] sm:$0xff]
        %v341 = vstv %s337
        %v342 = vmul.f32 %v341, %v339
        %v343 = vstv %s338
        %v344 = vmul.f32 %v343, %v340
        %v345 = vsub.f32 %v342, %v344
        %v346 = vmul.f32 %v341, %v345
        %v347 = vsub.f32 %v339, %v346
        %v348 = vrcp.pop %v343
        %v349 = vmul.f32 %v347, %v348
        %350 = vst [vmem:[%s329] sm:$0xff] %v349
        %351 = vst [vmem:[%s336] sm:$0xff] %v345
        %s352 = sand.u32 %s151, 1
        %s353 = scalar_lea.sflag [#allocation4], %s352
        %s354 = sand.u32 %s151, 1
        %s355 = smul.addr %s354, 8
        %s356 = scalar_lea.vmem [#allocation11], %s355
        %s357 = sand.u32 %s179, 1
        %s358 = scalar_lea.sflag [#allocation13], %s357
        %s359 = sand.u32 %s179, 1
        %s360 = smul.addr %s359, 8
        %s361 = scalar_lea.vmem [#allocation12], %s360
        // Predicated region
        $region53: #{tpu_custom_call.1} parent=35 // pred_check
          %p362 = pneg %p161
        $region54: #{tpu_custom_call.1} parent=35 // pred_check_branch
          %364 = sbr.rel (%p362) target = $region56
        $region55: #{tpu_custom_call.1} parent=35 // pred_region
          %s366 = ssub.s32 128, 128
          %367 = vsyncadd %s353, %s366
          %s368 = sadd.s32 %s36, %s35
          %s369 = smul.addr %s368, 128
          %s370 = scalar_lea.hbm %s4, %s369
          %s372 = sshll.u32 %s356, 4
          %s373 = int_to_ptr.vmem [resolvable:$true] %s372
          %375 = dma.vmem_to_hbm [thread:$0]  %s373, 128, %s370, %s353
        $region56: #{tpu_custom_call.1} parent=35 // pred_fallthru
          _
        // Predicated region
        $region57: #{tpu_custom_call.1} parent=35 // pred_check
          %p376 = pneg %p189
        $region58: #{tpu_custom_call.1} parent=35 // pred_check_branch
          %378 = sbr.rel (%p376) target = $region60
        $region59: #{tpu_custom_call.1} parent=35 // pred_region
          %s380 = ssub.s32 128, 128
          %381 = vsyncadd %s358, %s380
          %s382 = sadd.s32 %s36, %s35
          %s383 = smul.addr %s382, 128
          %s384 = scalar_lea.hbm %s5, %s383
          %s386 = sshll.u32 %s361, 4
          %s387 = int_to_ptr.vmem [resolvable:$true] %s386
          %389 = dma.vmem_to_hbm [thread:$0]  %s387, 128, %s384, %s358
        $region60: #{tpu_custom_call.1} parent=35 // pred_fallthru
          _
      $region36: #{tpu_custom_call.1} parent=5 // pred_fallthru
        _
      %p390 = scmp.le.s32.totalorder 2, %s26
      // Predicated region
      $region61: #{tpu_custom_call.1} parent=5 // pred_check
        %p391 = pneg %p390
      $region62: #{tpu_custom_call.1} parent=5 // pred_check_branch
        %393 = sbr.rel (%p391) target = $region64
      $region63: #{tpu_custom_call.1} parent=5 // pred_region
        %s394 = ssub.s32 %s26, 2
        // Predicated region
        $region65: #{tpu_custom_call.1} parent=63 // pred_check
          %p395 = pneg %p167
        $region66: #{tpu_custom_call.1} parent=63 // pred_check_branch
          %397 = sbr.rel (%p395) target = $region68
        $region67: #{tpu_custom_call.1} parent=63 // pred_region
          %s398 = sand.u32 %s152, 1
          %s399 = scalar_lea.sflag [#allocation4], %s398
          %s400 = sand.u32 %s152, 1
          %s401 = smul.addr %s400, 8
          %s402 = scalar_lea.vmem [#allocation11], %s401
          %403 = dma.done %s399, 128
        $region68: #{tpu_custom_call.1} parent=63 // pred_fallthru
          _
        // Predicated region
        $region69: #{tpu_custom_call.1} parent=63 // pred_check
          %p404 = pneg %p195
        $region70: #{tpu_custom_call.1} parent=63 // pred_check_branch
          %406 = sbr.rel (%p404) target = $region72
        $region71: #{tpu_custom_call.1} parent=63 // pred_region
          %s407 = sand.u32 %s180, 1
          %s408 = scalar_lea.sflag [#allocation13], %s407
          %s409 = sand.u32 %s180, 1
          %s410 = smul.addr %s409, 8
          %s411 = scalar_lea.vmem [#allocation12], %s410
          %412 = dma.done %s408, 128
        $region72: #{tpu_custom_call.1} parent=63 // pred_fallthru
          _
      $region64: #{tpu_custom_call.1} parent=5 // pred_fallthru
        _
    $region6: #{tpu_custom_call.1} parent=1 // loop_footer
      %s30 = sadd.s32 1, %s26
    $region7: #{tpu_custom_call.1} parent=1 // loop_footer_branch
      %25 = sbr.rel target = $region3
    $region8: #{tpu_custom_call.1} parent=1 // loop_exit
      _
    %413 = vsyncpa [#allocation3], 1
    %s414 = scalar_lea.sflag [#allocation3], 1
    %415 = vsyncpa %s414, 1
    %416 = vsyncpa [#allocation7], 1
    %s417 = scalar_lea.sflag [#allocation7], 1
    %418 = vsyncpa %s417, 1
    %419 = vsyncpa [#allocation4], 1
    %s420 = scalar_lea.sflag [#allocation4], 1
    %421 = vsyncpa %s420, 1
    %422 = vsyncpa [#allocation13], 1
    %s423 = scalar_lea.sflag [#allocation13], 1
    %424 = vsyncpa %s423, 1
    %425 = vsyncpa [#allocation5], 1
    %s426 = scalar_lea.sflag [#allocation5], 1
    %427 = vsyncpa %s426, 1
    %428 = vsyncpa [#allocation10], 1

</llo_original>
